<compile_context>
chip_gen: v6e
topology: v6e:2x2x1
jax: 0.10.0
libtpu: 0.0.40
codegen_flags: <defaults>
</compile_context>

<pallas_src>
import jax
import jax.numpy as jnp
from jax.experimental import pallas as pl
from jax.experimental.pallas import tpu as pltpu


def _round_up(x, m):
    return ((x + m - 1) // m) * m


def _wrapper_logits_kernel(x_ref, p_ref, w_ref, b_ref, out_ref, pooled_ref):
    """Grid cell (i, k): accumulate channel sums for batch tile i over C*HW slice k.

    x_ref:      (TN, TK)  bf16   raw (un-normalized) flattened image slice
    p_ref:      (TK, C)   bf16   0/1 channel-indicator slice (zero rows in padding)
    w_ref:      (C, Kp)   f32    head with (x-mean)/std and 1/HW folded in
    b_ref:      (1, Kp)   f32    folded bias
    out_ref:    (TN, Kp)  f32    padded logits (sliced to (N, K) in the wrapper)
    pooled_ref: (TN, C)   f32    VMEM accumulator of per-channel spatial sums
    """
    k = pl.program_id(1)

    @pl.when(k == 0)
    def _():
        pooled_ref[...] = jnp.zeros_like(pooled_ref)

    # Stage 1: spatial sums ride the MXU (bf16 inputs, f32 accumulation).
    pooled_ref[...] += jnp.dot(x_ref[...], p_ref[...],
                               preferred_element_type=jnp.float32)

    # Stage 2: tiny head matmul + bias, once per batch tile.
    @pl.when(k == pl.num_programs(1) - 1)
    def _():
        out_ref[...] = (
            jnp.dot(pooled_ref[...], w_ref[...],
                    preferred_element_type=jnp.float32)
            + b_ref[...]
        ).astype(out_ref.dtype)


def model_wrapper_for_logits(x_nchw, mean, std, w, b, *, block_n=512,
                             x_dtype=jnp.bfloat16,
                             max_x_block_bytes=4 * 1024 * 1024):
    """JAX wrapper: folds normalization / GAP into the head and launches the kernel."""
    n, c, h, ww = x_nchw.shape
    hw = h * ww
    ck = c * hw
    k_out = w.shape[1]

    # --- fold (x - mean)/std and the 1/HW of global average pooling into the head ---
    # torch registers mean.view(-1,1,1)/std.view(-1,1,1); broadcast length-1 to C.
    mean_c = jnp.broadcast_to(jnp.asarray(mean, jnp.float32).reshape(-1), (c,))
    std_c = jnp.broadcast_to(jnp.asarray(std, jnp.float32).reshape(-1), (c,))
    inv_std = 1.0 / std_c                                   # hoisted out of the kernel
    w32 = jnp.asarray(w, jnp.float32)
    b32 = jnp.asarray(b, jnp.float32)
    w_eff = (inv_std[:, None] * w32) / hw                   # (C, K)
    b_eff = b32 - (mean_c * inv_std) @ w32                  # (K,)

    kp = _round_up(k_out, 128)                              # lane-dense output width
    w_eff = jnp.pad(w_eff, ((0, 0), (0, kp - k_out)))                       # (C, Kp)
    b_eff = jnp.pad(b_eff.reshape(1, k_out), ((0, 0), (0, kp - k_out)))     # (1, Kp)

    # --- batch tiling: 8-sublane aligned; >=2 programs when N allows (v7x megacore) ---
    n8 = _round_up(n, 8)
    if n8 >= 16:
        tn = min(block_n, _round_up((n8 + 1) // 2, 8))
    else:
        tn = n8
    n_pad = _round_up(n8, tn)
    nb = n_pad // tn

    # --- contraction tiling over C*HW so one x block never blows VMEM -----------------
    x_bytes = jnp.dtype(x_dtype).itemsize
    tk_cap = max(128, (max_x_block_bytes // (tn * x_bytes)) // 128 * 128)
    tk = min(_round_up(ck, 128), tk_cap)
    ck_pad = _round_up(ck, tk)
    nk = ck_pad // tk

    # --- flattened, lane-dense activations streamed in the reduced dtype --------------
    # (In a real pipeline x would already live in HBM as bf16; the cast here is a
    #  one-off XLA op outside the kernel.)
    x2 = x_nchw.reshape(n, ck).astype(x_dtype)
    x2 = jnp.pad(x2, ((0, n_pad - n), (0, ck_pad - ck)))

    # --- 0/1 channel-indicator pooling matrix (exact in bf16); zero rows in padding ---
    ch_of_col = jnp.arange(ck, dtype=jnp.int32) // hw                       # (ck,)
    pmat = (ch_of_col[:, None] == jnp.arange(c, dtype=jnp.int32)[None, :])
    pmat = jnp.pad(pmat.astype(x_dtype), ((0, ck_pad - ck), (0, 0)))        # (ck_pad, C)

    flops = 2 * n_pad * ck_pad * c + 2 * n_pad * c * kp
    bytes_accessed = (x2.size * x_bytes + nb * pmat.size * x_bytes
                      + w_eff.size * 4 + b_eff.size * 4 + n_pad * kp * 4)

    out = pl.pallas_call(
        _wrapper_logits_kernel,
        out_shape=jax.ShapeDtypeStruct((n_pad, kp), jnp.float32),
        grid_spec=pltpu.PrefetchScalarGridSpec(
            num_scalar_prefetch=0,
            grid=(nb, nk),                                  # reduction axis last
            in_specs=[
                pl.BlockSpec((tn, tk), lambda i, k: (i, k)),   # x: streamed per tile
                pl.BlockSpec((tk, c), lambda i, k: (k, 0)),    # P: streamed with k
                pl.BlockSpec((c, kp), lambda i, k: (0, 0)),    # W_eff: resident (KiB)
                pl.BlockSpec((1, kp), lambda i, k: (0, 0)),    # b_eff: resident
            ],
            out_specs=pl.BlockSpec((tn, kp), lambda i, k: (i, 0)),
            scratch_shapes=[pltpu.VMEM((tn, c), jnp.float32)],
        ),
        compiler_params=pltpu.CompilerParams(
            dimension_semantics=("parallel", "arbitrary"),
            vmem_limit_bytes=32 * 1024 * 1024,
        ),
        cost_estimate=pl.CostEstimate(
            flops=flops, transcendentals=0, bytes_accessed=bytes_accessed),
    )(x2, pmat, w_eff, b_eff)

    return out[:n, :k_out]


if __name__ == "__main__":
    # Small shapes consistent with the module's forward: NCHW images, per-channel
    # normalization buffers, K-way classification head.
    N, C, H, W = 2, 4, 16, 16
    K = 10

    key = jax.random.PRNGKey(0)
    kx, kw, kb = jax.random.split(key, 3)

    x = jax.random.normal(kx, (N, C, H, W), dtype=jnp.float32)

    # Deterministic "pretraining" normalization buffers (per channel).
    mean = jnp.array([0.485, 0.456, 0.406, 0.5], dtype=jnp.float32)
    std = jnp.array([0.229, 0.224, 0.225, 0.25], dtype=jnp.float32)

    # Deterministic synthetic classification-head parameters.
    w = jax.random.normal(kw, (C, K), dtype=jnp.float32) * 0.1
    b = jax.random.normal(kb, (K,), dtype=jnp.float32) * 0.01

    logits = model_wrapper_for_logits(x, mean, std, w, b)
    logits = jax.block_until_ready(logits)

    # Pure-JAX f32 reference (un-folded math, matching the torch module exactly).
    xn_ref = (x - mean.reshape(1, C, 1, 1)) / std.reshape(1, C, 1, 1)
    pooled_ref = xn_ref.mean(axis=(2, 3))
    logits_ref = pooled_ref @ w + b[None, :]
    assert logits.shape == (N, K)
    # bf16 streaming of the activations quantizes the pooled sum slightly -> relaxed tol.
    assert jnp.allclose(logits, logits_ref, atol=5e-3, rtol=5e-3)

    print("KERNEL_OK")
</pallas_src>

<mosaic_0001>
module attributes {stable_mosaic.version = 11 : i64} {
  func.func @_wrapper_logits_kernel(%arg0: i32, %arg1: i32, %arg2: memref<8x1024xbf16, #tpu.memory_space<vmem>>, %arg3: memref<1024x4xbf16, #tpu.memory_space<vmem>>, %arg4: memref<4x128xf32, #tpu.memory_space<vmem>>, %arg5: memref<1x128xf32, #tpu.memory_space<vmem>>, %arg6: memref<8x128xf32, #tpu.memory_space<vmem>>, %arg7: memref<8x4xf32, #tpu.memory_space<vmem>>) attributes {dimension_semantics = [#tpu.dimension_semantics<parallel>, #tpu.dimension_semantics<arbitrary>], iteration_bounds = array<i64: 1, 1>, scalar_prefetch = 0 : i64, scratch_operands = 1 : i64, tpu.core_type = #tpu.core_type<tc>, window_params = [{transform_indices = @transform_0, window_bounds = array<i64: 8, 1024>}, {transform_indices = @transform_1, window_bounds = array<i64: 1024, 4>}, {pipeline_mode = #tpu.pipeline_mode<synchronous>, transform_indices = @transform_2, window_bounds = array<i64: 4, 128>}, {pipeline_mode = #tpu.pipeline_mode<synchronous>, transform_indices = @transform_3, window_bounds = array<i64: 1, 128>}, {transform_indices = @transform_4, window_bounds = array<i64: 8, 128>}]} {
    %c0_i32 = arith.constant 0 : i32
    %0 = arith.cmpi eq, %arg1, %c0_i32 : i32
    %1 = arith.extui %0 : i1 to i32
    %c0_i32_0 = arith.constant 0 : i32
    %2 = arith.cmpi ne, %1, %c0_i32_0 : i32
    scf.if %2 {
      %cst_10 = arith.constant 0.000000e+00 : f32
      %12 = vector.broadcast %cst_10 : f32 to vector<8x4xf32>
      %c0_11 = arith.constant 0 : index
      %c0_12 = arith.constant 0 : index
      %13 = vector.load %arg7[%c0_11, %c0_12] : memref<8x4xf32, #tpu.memory_space<vmem>>, vector<8x4xf32>
      tpu.vector_store %arg7[%c0_11, %c0_12], %12 {strides = array<i32>} : memref<8x4xf32, #tpu.memory_space<vmem>>, vector<8x4xf32>,
    } else {
    }
    %c0 = arith.constant 0 : index
    %c0_1 = arith.constant 0 : index
    %3 = vector.load %arg7[%c0, %c0_1] : memref<8x4xf32, #tpu.memory_space<vmem>>, vector<8x4xf32>
    %c0_2 = arith.constant 0 : index
    %c0_3 = arith.constant 0 : index
    %4 = vector.load %arg2[%c0_2, %c0_3] : memref<8x1024xbf16, #tpu.memory_space<vmem>>, vector<8x1024xbf16>
    %c0_4 = arith.constant 0 : index
    %c0_5 = arith.constant 0 : index
    %5 = vector.load %arg3[%c0_4, %c0_5] : memref<1024x4xbf16, #tpu.memory_space<vmem>>, vector<1024x4xbf16>
    %cst = arith.constant dense<0.000000e+00> : vector<8x4xf32>
    %6 = tpu.matmul %4, %5, %cst {dimension_numbers = #tpu.dot_dimension_numbers<[1], [0], [0], [1], [0, 0, 1, 1], [], []>} : vector<8x1024xbf16>, vector<1024x4xbf16>, vector<8x4xf32> -> vector<8x4xf32>
    %7 = arith.addf %3, %6 : vector<8x4xf32>
    %c0_6 = arith.constant 0 : index
    %c0_7 = arith.constant 0 : index
    %8 = vector.load %arg7[%c0_6, %c0_7] : memref<8x4xf32, #tpu.memory_space<vmem>>, vector<8x4xf32>
    tpu.vector_store %arg7[%c0_6, %c0_7], %7 {strides = array<i32>} : memref<8x4xf32, #tpu.memory_space<vmem>>, vector<8x4xf32>,
    %c0_i32_8 = arith.constant 0 : i32
    %9 = arith.cmpi eq, %arg1, %c0_i32_8 : i32
    %10 = arith.extui %9 : i1 to i32
    %c0_i32_9 = arith.constant 0 : i32
    %11 = arith.cmpi ne, %10, %c0_i32_9 : i32
    scf.if %11 {
      %c0_10 = arith.constant 0 : index
      %c0_11 = arith.constant 0 : index
      %12 = vector.load %arg7[%c0_10, %c0_11] : memref<8x4xf32, #tpu.memory_space<vmem>>, vector<8x4xf32>
      %c0_12 = arith.constant 0 : index
      %c0_13 = arith.constant 0 : index
      %13 = vector.load %arg4[%c0_12, %c0_13] : memref<4x128xf32, #tpu.memory_space<vmem>>, vector<4x128xf32>
      %cst_14 = arith.constant dense<0.000000e+00> : vector<8x128xf32>
      %14 = tpu.matmul %12, %13, %cst_14 {dimension_numbers = #tpu.dot_dimension_numbers<[1], [0], [0], [1], [0, 0, 1, 1], [], []>} : vector<8x4xf32>, vector<4x128xf32>, vector<8x128xf32> -> vector<8x128xf32>
      %c0_15 = arith.constant 0 : index
      %c0_16 = arith.constant 0 : index
      %15 = vector.load %arg5[%c0_15, %c0_16] : memref<1x128xf32, #tpu.memory_space<vmem>>, vector<1x128xf32>
      %16 = vector.broadcast %15 : vector<1x128xf32> to vector<8x128xf32>
      %17 = arith.addf %14, %16 : vector<8x128xf32>
      %c0_17 = arith.constant 0 : index
      %c0_18 = arith.constant 0 : index
      %18 = vector.load %arg6[%c0_17, %c0_18] : memref<8x128xf32, #tpu.memory_space<vmem>>, vector<8x128xf32>
      tpu.vector_store %arg6[%c0_17, %c0_18], %17 {strides = array<i32>} : memref<8x128xf32, #tpu.memory_space<vmem>>, vector<8x128xf32>,
    } else {
    }
    return
  }
  func.func @transform_0(%arg0: i32, %arg1: i32) -> (i32, i32) {
    %c0_i32 = arith.constant 0 : i32
    return %arg0, %arg1 : i32, i32
  }
  func.func @transform_1(%arg0: i32, %arg1: i32) -> (i32, i32) {
    %c0_i32 = arith.constant 0 : i32
    %c0_i32_0 = arith.constant 0 : i32
    return %arg1, %c0_i32 : i32, i32
  }
  func.func @transform_2(%arg0: i32, %arg1: i32) -> (i32, i32) {
    %c0_i32 = arith.constant 0 : i32
    %c0_i32_0 = arith.constant 0 : i32
    %c0_i32_1 = arith.constant 0 : i32
    return %c0_i32, %c0_i32_0 : i32, i32
  }
  func.func @transform_3(%arg0: i32, %arg1: i32) -> (i32, i32) {
    %c0_i32 = arith.constant 0 : i32
    %c0_i32_0 = arith.constant 0 : i32
    %c0_i32_1 = arith.constant 0 : i32
    return %c0_i32, %c0_i32_0 : i32, i32
  }
  func.func @transform_4(%arg0: i32, %arg1: i32) -> (i32, i32) {
    %c0_i32 = arith.constant 0 : i32
    %c0_i32_0 = arith.constant 0 : i32
    return %arg0, %c0_i32 : i32, i32
  }
}

</mosaic_0001>

<llo_original>
// kernel: tpu_custom_call.1
$region0: #{tpu_custom_call.1}
  #allocation0 [shape = 'u32[]', space=smem, size = 0x4, offset = 0x4, fixed_abs, tag = 'smem constant byte address 0x4 - core index']
  #allocation1 [shape = 'u32[144,128]{1,0:T(1,128)}', space=vmem, size = 0x12000, scoped, tag = 'internal scratch']
  #allocation2 [shape = 'f32[8,4]{1,0:T(8,128)}', space=vmem, size = 0x1000, scoped, tag = 'scratch operand']
  %s0 = inlined_call_operand.vmem [shape: bf16[8,1024], index: 0, kind: input, shape index: {}]
  %s1 = inlined_call_operand.vmem [shape: bf16[1024,4], index: 1, kind: input, shape index: {}]
  %s2 = inlined_call_operand.vmem [shape: f32[4,128], index: 2, kind: input, shape index: {}]
  %s3 = inlined_call_operand.vmem [shape: f32[1,128], index: 3, kind: input, shape index: {}]
  %s4 = inlined_call_operand.hbm [shape: f32[8,128], index: 4, kind: output, shape index: {}]
  %s5 = sld [smem:[#allocation0]]
  $region34: #{tpu_custom_call.1} parent=0
    _
  %s7 = ssub.s32 1, %s5
  %s8 = scalar_select 0, %s7, %s5
  $region1: #{tpu_custom_call.1} parent=0
    #allocation3 [shape = 'u8[4096]{0}', space=vmem, size = 0x1000, scoped, tag = 'output window, operand 0, single buffered']
    #allocation4 [shape = 's32[1]{0}', space=sflag, size = 0x4, scoped, tag = 'scoped memory for tpu_custom_call.1']
    %9 = vsyncpa [#allocation4], 0
    // Predicated region
    $region2: #{tpu_custom_call.1} parent=1 // pred_check
      _
    $region3: #{tpu_custom_call.1} parent=1 // pred_check_branch
      %11 = sbr.rel (0) target = $region5
    $region4: #{tpu_custom_call.1} parent=1 // pred_region
      _
    $region5: #{tpu_custom_call.1} parent=1 // pred_fallthru
      _
    // Predicated region
    $region6: #{tpu_custom_call.1} parent=1 // pred_check
      _
    $region7: #{tpu_custom_call.1} parent=1 // pred_check_branch
      %13 = sbr.rel (0) target = $region9
    $region8: #{tpu_custom_call.1} parent=1 // pred_region
      _
    $region9: #{tpu_custom_call.1} parent=1 // pred_fallthru
      _
    // Predicated region
    $region10: #{tpu_custom_call.1} parent=1 // pred_check
      _
    $region11: #{tpu_custom_call.1} parent=1 // pred_check_branch
      %15 = sbr.rel (0) target = $region13
    $region12: #{tpu_custom_call.1} parent=1 // pred_region
      _
    $region13: #{tpu_custom_call.1} parent=1 // pred_fallthru
      _
    // Predicated region
    $region14: #{tpu_custom_call.1} parent=1 // pred_check
      _
    $region15: #{tpu_custom_call.1} parent=1 // pred_check_branch
      %17 = sbr.rel (0) target = $region17
    $region16: #{tpu_custom_call.1} parent=1 // pred_region
      _
    $region17: #{tpu_custom_call.1} parent=1 // pred_fallthru
      _
    %p19 = scmp.eq.s32.totalorder 0, 0
    // Predicated region
    $region18: #{tpu_custom_call.1} parent=1 // pred_check
      %p20 = pneg %p19
    $region19: #{tpu_custom_call.1} parent=1 // pred_check_branch
      %22 = sbr.rel (%p20) target = $region21
    $region20: #{tpu_custom_call.1} parent=1 // pred_region
      %vm23 = vcmask 31744
      %24 = vst.msk [vmem:[#allocation2] sm:$0xff] %vm23, 0.0
    $region21: #{tpu_custom_call.1} parent=1 // pred_fallthru
      _
    %v25 = vld [vmem:[#allocation2] sm:$0xff]
    %v26 = vld [vmem:[%s0] sm:$0xff]
    %v27 = vld [vmem:[%s0 + $0x8] sm:$0xff]
    %v28 = vld [vmem:[%s0 + $0x10] sm:$0xff]
    %v29 = vld [vmem:[%s0 + $0x18] sm:$0xff]
    %v30 = vld [vmem:[%s1] sm:$0xf]
    %v31 = vld [vmem:[%s1 + $0x4] sm:$0xf]
    %v32 = vld [vmem:[%s1 + $0x8] sm:$0xf]
    %v33 = vld [vmem:[%s1 + $0xc] sm:$0xf]
    %v34 = vld [vmem:[%s1 + $0x10] sm:$0xf]
    %v35 = vld [vmem:[%s1 + $0x14] sm:$0xf]
    %v36 = vld [vmem:[%s1 + $0x18] sm:$0xf]
    %v37 = vld [vmem:[%s1 + $0x1c] sm:$0xf]
    %v38 = vld [vmem:[%s1 + $0x20] sm:$0xf]
    %v39 = vld [vmem:[%s1 + $0x24] sm:$0xf]
    %v40 = vld [vmem:[%s1 + $0x28] sm:$0xf]
    %v41 = vld [vmem:[%s1 + $0x2c] sm:$0xf]
    %v42 = vld [vmem:[%s1 + $0x30] sm:$0xf]
    %v43 = vld [vmem:[%s1 + $0x34] sm:$0xf]
    %v44 = vld [vmem:[%s1 + $0x38] sm:$0xf]
    %v45 = vld [vmem:[%s1 + $0x3c] sm:$0xf]
    %v46 = vld [vmem:[%s1 + $0x40] sm:$0xf]
    %v47 = vld [vmem:[%s1 + $0x44] sm:$0xf]
    %v48 = vld [vmem:[%s1 + $0x48] sm:$0xf]
    %v49 = vld [vmem:[%s1 + $0x4c] sm:$0xf]
    %v50 = vld [vmem:[%s1 + $0x50] sm:$0xf]
    %v51 = vld [vmem:[%s1 + $0x54] sm:$0xf]
    %v52 = vld [vmem:[%s1 + $0x58] sm:$0xf]
    %v53 = vld [vmem:[%s1 + $0x5c] sm:$0xf]
    %v54 = vld [vmem:[%s1 + $0x60] sm:$0xf]
    %v55 = vld [vmem:[%s1 + $0x64] sm:$0xf]
    %v56 = vld [vmem:[%s1 + $0x68] sm:$0xf]
    %v57 = vld [vmem:[%s1 + $0x6c] sm:$0xf]
    %v58 = vld [vmem:[%s1 + $0x70] sm:$0xf]
    %v59 = vld [vmem:[%s1 + $0x74] sm:$0xf]
    %v60 = vld [vmem:[%s1 + $0x78] sm:$0xf]
    %v61 = vld [vmem:[%s1 + $0x7c] sm:$0xf]
    %v62 = vld [vmem:[%s1 + $0x80] sm:$0xf]
    %v63 = vld [vmem:[%s1 + $0x84] sm:$0xf]
    %v64 = vld [vmem:[%s1 + $0x88] sm:$0xf]
    %v65 = vld [vmem:[%s1 + $0x8c] sm:$0xf]
    %v66 = vld [vmem:[%s1 + $0x90] sm:$0xf]
    %v67 = vld [vmem:[%s1 + $0x94] sm:$0xf]
    %v68 = vld [vmem:[%s1 + $0x98] sm:$0xf]
    %v69 = vld [vmem:[%s1 + $0x9c] sm:$0xf]
    %v70 = vld [vmem:[%s1 + $0xa0] sm:$0xf]
    %v71 = vld [vmem:[%s1 + $0xa4] sm:$0xf]
    %v72 = vld [vmem:[%s1 + $0xa8] sm:$0xf]
    %v73 = vld [vmem:[%s1 + $0xac] sm:$0xf]
    %v74 = vld [vmem:[%s1 + $0xb0] sm:$0xf]
    %v75 = vld [vmem:[%s1 + $0xb4] sm:$0xf]
    %v76 = vld [vmem:[%s1 + $0xb8] sm:$0xf]
    %v77 = vld [vmem:[%s1 + $0xbc] sm:$0xf]
    %v78 = vld [vmem:[%s1 + $0xc0] sm:$0xf]
    %v79 = vld [vmem:[%s1 + $0xc4] sm:$0xf]
    %v80 = vld [vmem:[%s1 + $0xc8] sm:$0xf]
    %v81 = vld [vmem:[%s1 + $0xcc] sm:$0xf]
    %v82 = vld [vmem:[%s1 + $0xd0] sm:$0xf]
    %v83 = vld [vmem:[%s1 + $0xd4] sm:$0xf]
    %v84 = vld [vmem:[%s1 + $0xd8] sm:$0xf]
    %v85 = vld [vmem:[%s1 + $0xdc] sm:$0xf]
    %v86 = vld [vmem:[%s1 + $0xe0] sm:$0xf]
    %v87 = vld [vmem:[%s1 + $0xe4] sm:$0xf]
    %v88 = vld [vmem:[%s1 + $0xe8] sm:$0xf]
    %v89 = vld [vmem:[%s1 + $0xec] sm:$0xf]
    %v90 = vld [vmem:[%s1 + $0xf0] sm:$0xf]
    %v91 = vld [vmem:[%s1 + $0xf4] sm:$0xf]
    %v92 = vld [vmem:[%s1 + $0xf8] sm:$0xf]
    %v93 = vld [vmem:[%s1 + $0xfc] sm:$0xf]
    %v94 = vld [vmem:[%s1 + $0x100] sm:$0xf]
    %v95 = vld [vmem:[%s1 + $0x104] sm:$0xf]
    %v96 = vld [vmem:[%s1 + $0x108] sm:$0xf]
    %v97 = vld [vmem:[%s1 + $0x10c] sm:$0xf]
    %v98 = vld [vmem:[%s1 + $0x110] sm:$0xf]
    %v99 = vld [vmem:[%s1 + $0x114] sm:$0xf]
    %v100 = vld [vmem:[%s1 + $0x118] sm:$0xf]
    %v101 = vld [vmem:[%s1 + $0x11c] sm:$0xf]
    %v102 = vld [vmem:[%s1 + $0x120] sm:$0xf]
    %v103 = vld [vmem:[%s1 + $0x124] sm:$0xf]
    %v104 = vld [vmem:[%s1 + $0x128] sm:$0xf]
    %v105 = vld [vmem:[%s1 + $0x12c] sm:$0xf]
    %v106 = vld [vmem:[%s1 + $0x130] sm:$0xf]
    %v107 = vld [vmem:[%s1 + $0x134] sm:$0xf]
    %v108 = vld [vmem:[%s1 + $0x138] sm:$0xf]
    %v109 = vld [vmem:[%s1 + $0x13c] sm:$0xf]
    %v110 = vld [vmem:[%s1 + $0x140] sm:$0xf]
    %v111 = vld [vmem:[%s1 + $0x144] sm:$0xf]
    %v112 = vld [vmem:[%s1 + $0x148] sm:$0xf]
    %v113 = vld [vmem:[%s1 + $0x14c] sm:$0xf]
    %v114 = vld [vmem:[%s1 + $0x150] sm:$0xf]
    %v115 = vld [vmem:[%s1 + $0x154] sm:$0xf]
    %v116 = vld [vmem:[%s1 + $0x158] sm:$0xf]
    %v117 = vld [vmem:[%s1 + $0x15c] sm:$0xf]
    %v118 = vld [vmem:[%s1 + $0x160] sm:$0xf]
    %v119 = vld [vmem:[%s1 + $0x164] sm:$0xf]
    %v120 = vld [vmem:[%s1 + $0x168] sm:$0xf]
    %v121 = vld [vmem:[%s1 + $0x16c] sm:$0xf]
    %v122 = vld [vmem:[%s1 + $0x170] sm:$0xf]
    %v123 = vld [vmem:[%s1 + $0x174] sm:$0xf]
    %v124 = vld [vmem:[%s1 + $0x178] sm:$0xf]
    %v125 = vld [vmem:[%s1 + $0x17c] sm:$0xf]
    %v126 = vld [vmem:[%s1 + $0x180] sm:$0xf]
    %v127 = vld [vmem:[%s1 + $0x184] sm:$0xf]
    %v128 = vld [vmem:[%s1 + $0x188] sm:$0xf]
    %v129 = vld [vmem:[%s1 + $0x18c] sm:$0xf]
    %v130 = vld [vmem:[%s1 + $0x190] sm:$0xf]
    %v131 = vld [vmem:[%s1 + $0x194] sm:$0xf]
    %v132 = vld [vmem:[%s1 + $0x198] sm:$0xf]
    %v133 = vld [vmem:[%s1 + $0x19c] sm:$0xf]
    %v134 = vld [vmem:[%s1 + $0x1a0] sm:$0xf]
    %v135 = vld [vmem:[%s1 + $0x1a4] sm:$0xf]
    %v136 = vld [vmem:[%s1 + $0x1a8] sm:$0xf]
    %v137 = vld [vmem:[%s1 + $0x1ac] sm:$0xf]
    %v138 = vld [vmem:[%s1 + $0x1b0] sm:$0xf]
    %v139 = vld [vmem:[%s1 + $0x1b4] sm:$0xf]
    %v140 = vld [vmem:[%s1 + $0x1b8] sm:$0xf]
    %v141 = vld [vmem:[%s1 + $0x1bc] sm:$0xf]
    %v142 = vld [vmem:[%s1 + $0x1c0] sm:$0xf]
    %v143 = vld [vmem:[%s1 + $0x1c4] sm:$0xf]
    %v144 = vld [vmem:[%s1 + $0x1c8] sm:$0xf]
    %v145 = vld [vmem:[%s1 + $0x1cc] sm:$0xf]
    %v146 = vld [vmem:[%s1 + $0x1d0] sm:$0xf]
    %v147 = vld [vmem:[%s1 + $0x1d4] sm:$0xf]
    %v148 = vld [vmem:[%s1 + $0x1d8] sm:$0xf]
    %v149 = vld [vmem:[%s1 + $0x1dc] sm:$0xf]
    %v150 = vld [vmem:[%s1 + $0x1e0] sm:$0xf]
    %v151 = vld [vmem:[%s1 + $0x1e4] sm:$0xf]
    %v152 = vld [vmem:[%s1 + $0x1e8] sm:$0xf]
    %v153 = vld [vmem:[%s1 + $0x1ec] sm:$0xf]
    %v154 = vld [vmem:[%s1 + $0x1f0] sm:$0xf]
    %v155 = vld [vmem:[%s1 + $0x1f4] sm:$0xf]
    %v156 = vld [vmem:[%s1 + $0x1f8] sm:$0xf]
    %v157 = vld [vmem:[%s1 + $0x1fc] sm:$0xf]
    %v162 = vunpack.c.l.b16 %v26
    %v163 = vunpack.c.h.b16 %v26
    %v164 = vunpack.c.l.b16 %v27
    %v165 = vunpack.c.h.b16 %v27
    %v166 = vunpack.c.l.b16 %v28
    %v167 = vunpack.c.h.b16 %v28
    %v168 = vunpack.c.l.b16 %v29
    %v169 = vunpack.c.h.b16 %v29
    %v170 = vpack.c.b16 %v162, %v162
    %v171 = vpack.c.b16 %v163, %v163
    %v172 = vpack.c.b16 %v164, %v164
    %v173 = vpack.c.b16 %v165, %v165
    %v174 = vpack.c.b16 %v166, %v166
    %v175 = vpack.c.b16 %v167, %v167
    %v176 = vpack.c.b16 %v168, %v168
    %v177 = vpack.c.b16 %v169, %v169
    %v314 = vunpack.c.l.b16 %v30
    %v315 = vunpack.c.l.b16 %v31
    %v316 = vunpack.c.l.b16 %v32
    %v317 = vunpack.c.l.b16 %v33
    %v318 = vunpack.c.l.b16 %v34
    %v319 = vunpack.c.l.b16 %v35
    %v320 = vunpack.c.l.b16 %v36
    %v321 = vunpack.c.l.b16 %v37
    %v322 = vunpack.c.l.b16 %v38
    %v323 = vunpack.c.l.b16 %v39
    %v324 = vunpack.c.l.b16 %v40
    %v325 = vunpack.c.l.b16 %v41
    %v326 = vunpack.c.l.b16 %v42
    %v327 = vunpack.c.l.b16 %v43
    %v328 = vunpack.c.l.b16 %v44
    %v329 = vunpack.c.l.b16 %v45
    %v330 = vunpack.c.l.b16 %v46
    %v331 = vunpack.c.l.b16 %v47
    %v332 = vunpack.c.l.b16 %v48
    %v333 = vunpack.c.l.b16 %v49
    %v334 = vunpack.c.l.b16 %v50
    %v335 = vunpack.c.l.b16 %v51
    %v336 = vunpack.c.l.b16 %v52
    %v337 = vunpack.c.l.b16 %v53
    %v338 = vunpack.c.l.b16 %v54
    %v339 = vunpack.c.l.b16 %v55
    %v340 = vunpack.c.l.b16 %v56
    %v341 = vunpack.c.l.b16 %v57
    %v342 = vunpack.c.l.b16 %v58
    %v343 = vunpack.c.l.b16 %v59
    %v344 = vunpack.c.l.b16 %v60
    %v345 = vunpack.c.l.b16 %v61
    %v346 = vunpack.c.l.b16 %v62
    %v347 = vunpack.c.l.b16 %v63
    %v348 = vunpack.c.l.b16 %v64
    %v349 = vunpack.c.l.b16 %v65
    %v350 = vunpack.c.l.b16 %v66
    %v351 = vunpack.c.l.b16 %v67
    %v352 = vunpack.c.l.b16 %v68
    %v353 = vunpack.c.l.b16 %v69
    %v354 = vunpack.c.l.b16 %v70
    %v355 = vunpack.c.l.b16 %v71
    %v356 = vunpack.c.l.b16 %v72
    %v357 = vunpack.c.l.b16 %v73
    %v358 = vunpack.c.l.b16 %v74
    %v359 = vunpack.c.l.b16 %v75
    %v360 = vunpack.c.l.b16 %v76
    %v361 = vunpack.c.l.b16 %v77
    %v362 = vunpack.c.l.b16 %v78
    %v363 = vunpack.c.l.b16 %v79
    %v364 = vunpack.c.l.b16 %v80
    %v365 = vunpack.c.l.b16 %v81
    %v366 = vunpack.c.l.b16 %v82
    %v367 = vunpack.c.l.b16 %v83
    %v368 = vunpack.c.l.b16 %v84
    %v369 = vunpack.c.l.b16 %v85
    %v370 = vunpack.c.l.b16 %v86
    %v371 = vunpack.c.l.b16 %v87
    %v372 = vunpack.c.l.b16 %v88
    %v373 = vunpack.c.l.b16 %v89
    %v374 = vunpack.c.l.b16 %v90
    %v375 = vunpack.c.l.b16 %v91
    %v376 = vunpack.c.l.b16 %v92
    %v377 = vunpack.c.l.b16 %v93
    %v378 = vunpack.c.l.b16 %v94
    %v379 = vunpack.c.l.b16 %v95
    %v380 = vunpack.c.l.b16 %v96
    %v381 = vunpack.c.l.b16 %v97
    %v382 = vunpack.c.l.b16 %v98
    %v383 = vunpack.c.l.b16 %v99
    %v384 = vunpack.c.l.b16 %v100
    %v385 = vunpack.c.l.b16 %v101
    %v386 = vunpack.c.l.b16 %v102
    %v387 = vunpack.c.l.b16 %v103
    %v388 = vunpack.c.l.b16 %v104
    %v389 = vunpack.c.l.b16 %v105
    %v390 = vunpack.c.l.b16 %v106
    %v391 = vunpack.c.l.b16 %v107
    %v392 = vunpack.c.l.b16 %v108
    %v393 = vunpack.c.l.b16 %v109
    %v394 = vunpack.c.l.b16 %v110
    %v395 = vunpack.c.l.b16 %v111
    %v396 = vunpack.c.l.b16 %v112
    %v397 = vunpack.c.l.b16 %v113
    %v398 = vunpack.c.l.b16 %v114
    %v399 = vunpack.c.l.b16 %v115
    %v400 = vunpack.c.l.b16 %v116
    %v401 = vunpack.c.l.b16 %v117
    %v402 = vunpack.c.l.b16 %v118
    %v403 = vunpack.c.l.b16 %v119
    %v404 = vunpack.c.l.b16 %v120
    %v405 = vunpack.c.l.b16 %v121
    %v406 = vunpack.c.l.b16 %v122
    %v407 = vunpack.c.l.b16 %v123
    %v408 = vunpack.c.l.b16 %v124
    %v409 = vunpack.c.l.b16 %v125
    %v410 = vunpack.c.l.b16 %v126
    %v411 = vunpack.c.l.b16 %v127
    %v412 = vunpack.c.l.b16 %v128
    %v413 = vunpack.c.l.b16 %v129
    %v414 = vunpack.c.l.b16 %v130
    %v415 = vunpack.c.l.b16 %v131
    %v416 = vunpack.c.l.b16 %v132
    %v417 = vunpack.c.l.b16 %v133
    %v418 = vunpack.c.l.b16 %v134
    %v419 = vunpack.c.l.b16 %v135
    %v420 = vunpack.c.l.b16 %v136
    %v421 = vunpack.c.l.b16 %v137
    %v422 = vunpack.c.l.b16 %v138
    %v423 = vunpack.c.l.b16 %v139
    %v424 = vunpack.c.l.b16 %v140
    %v425 = vunpack.c.l.b16 %v141
    %v426 = vunpack.c.l.b16 %v142
    %v427 = vunpack.c.l.b16 %v143
    %v428 = vunpack.c.l.b16 %v144
    %v429 = vunpack.c.l.b16 %v145
    %v430 = vunpack.c.l.b16 %v146
    %v431 = vunpack.c.l.b16 %v147
    %v432 = vunpack.c.l.b16 %v148
    %v433 = vunpack.c.l.b16 %v149
    %v434 = vunpack.c.l.b16 %v150
    %v435 = vunpack.c.l.b16 %v151
    %v436 = vunpack.c.l.b16 %v152
    %v437 = vunpack.c.l.b16 %v153
    %v438 = vunpack.c.l.b16 %v154
    %v439 = vunpack.c.l.b16 %v155
    %v440 = vunpack.c.l.b16 %v156
    %v441 = vunpack.c.l.b16 %v157
    %v442 = vpack.c.b16 %v315, %v314
    %v443 = vpack.c.b16 %v317, %v316
    %v444 = vpack.c.b16 %v319, %v318
    %v445 = vpack.c.b16 %v321, %v320
    %v446 = vpack.c.b16 %v323, %v322
    %v447 = vpack.c.b16 %v325, %v324
    %v448 = vpack.c.b16 %v327, %v326
    %v449 = vpack.c.b16 %v329, %v328
    %v450 = vpack.c.b16 %v331, %v330
    %v451 = vpack.c.b16 %v333, %v332
    %v452 = vpack.c.b16 %v335, %v334
    %v453 = vpack.c.b16 %v337, %v336
    %v454 = vpack.c.b16 %v339, %v338
    %v455 = vpack.c.b16 %v341, %v340
    %v456 = vpack.c.b16 %v343, %v342
    %v457 = vpack.c.b16 %v345, %v344
    %v458 = vpack.c.b16 %v347, %v346
    %v459 = vpack.c.b16 %v349, %v348
    %v460 = vpack.c.b16 %v351, %v350
    %v461 = vpack.c.b16 %v353, %v352
    %v462 = vpack.c.b16 %v355, %v354
    %v463 = vpack.c.b16 %v357, %v356
    %v464 = vpack.c.b16 %v359, %v358
    %v465 = vpack.c.b16 %v361, %v360
    %v466 = vpack.c.b16 %v363, %v362
    %v467 = vpack.c.b16 %v365, %v364
    %v468 = vpack.c.b16 %v367, %v366
    %v469 = vpack.c.b16 %v369, %v368
    %v470 = vpack.c.b16 %v371, %v370
    %v471 = vpack.c.b16 %v373, %v372
    %v472 = vpack.c.b16 %v375, %v374
    %v473 = vpack.c.b16 %v377, %v376
    %v474 = vpack.c.b16 %v379, %v378
    %v475 = vpack.c.b16 %v381, %v380
    %v476 = vpack.c.b16 %v383, %v382
    %v477 = vpack.c.b16 %v385, %v384
    %v478 = vpack.c.b16 %v387, %v386
    %v479 = vpack.c.b16 %v389, %v388
    %v480 = vpack.c.b16 %v391, %v390
    %v481 = vpack.c.b16 %v393, %v392
    %v482 = vpack.c.b16 %v395, %v394
    %v483 = vpack.c.b16 %v397, %v396
    %v484 = vpack.c.b16 %v399, %v398
    %v485 = vpack.c.b16 %v401, %v400
    %v486 = vpack.c.b16 %v403, %v402
    %v487 = vpack.c.b16 %v405, %v404
    %v488 = vpack.c.b16 %v407, %v406
    %v489 = vpack.c.b16 %v409, %v408
    %v490 = vpack.c.b16 %v411, %v410
    %v491 = vpack.c.b16 %v413, %v412
    %v492 = vpack.c.b16 %v415, %v414
    %v493 = vpack.c.b16 %v417, %v416
    %v494 = vpack.c.b16 %v419, %v418
    %v495 = vpack.c.b16 %v421, %v420
    %v496 = vpack.c.b16 %v423, %v422
    %v497 = vpack.c.b16 %v425, %v424
    %v498 = vpack.c.b16 %v427, %v426
    %v499 = vpack.c.b16 %v429, %v428
    %v500 = vpack.c.b16 %v431, %v430
    %v501 = vpack.c.b16 %v433, %v432
    %v502 = vpack.c.b16 %v435, %v434
    %v503 = vpack.c.b16 %v437, %v436
    %v504 = vpack.c.b16 %v439, %v438
    %v505 = vpack.c.b16 %v441, %v440
    %570 = vmatprep.subr.bf16.mxu0 0
    %571 = vmatpush1.bf16.msra.mxu0 %v449
    %572 = vmatprep.subr.bf16.mxu0 0
    %573 = vmatpush1.bf16.msra.mxu0 %v448
    %574 = vmatprep.subr.bf16.mxu0 0
    %575 = vmatpush1.bf16.msra.mxu0 %v447
    %576 = vmatprep.subr.bf16.mxu0 0
    %577 = vmatpush1.bf16.msra.mxu0 %v446
    %578 = vmatprep.subr.bf16.mxu0 0
    %579 = vmatpush1.bf16.msra.mxu0 %v445
    %580 = vmatprep.subr.bf16.mxu0 0
    %581 = vmatpush1.bf16.msra.mxu0 %v444
    %582 = vmatprep.subr.bf16.mxu0 0
    %583 = vmatpush1.bf16.msra.mxu0 %v443
    %584 = vmatprep.subr.bf16.mxu0 0
    %585 = vmatpush1.bf16.msra.mxu0 %v442
    %586 = vmatprep.subr.bf16.mxu0 0
    %587 = vmatpush2.bf16.msra.mxu0 %v457
    %588 = vmatprep.subr.bf16.mxu0 0
    %589 = vmatpush2.bf16.msra.mxu0 %v456
    %590 = vmatprep.subr.bf16.mxu0 0
    %591 = vmatpush2.bf16.msra.mxu0 %v455
    %592 = vmatprep.subr.bf16.mxu0 0
    %593 = vmatpush2.bf16.msra.mxu0 %v454
    %594 = vmatprep.subr.bf16.mxu0 0
    %595 = vmatpush2.bf16.msra.mxu0 %v453
    %596 = vmatprep.subr.bf16.mxu0 0
    %597 = vmatpush2.bf16.msra.mxu0 %v452
    %598 = vmatprep.subr.bf16.mxu0 0
    %599 = vmatpush2.bf16.msra.mxu0 %v451
    %600 = vmatprep.subr.bf16.mxu0 0
    %601 = vmatpush2.bf16.msra.mxu0 %v450
    %602 = vmatprep.mubr.bf16.mxu0 %v171
    %603 = vmatmul.mubr.bf16.gmra.mxu0 %v170
    %v604 = vpop.f32.mrf.mxu0
    %v605 = vadd.f32 0.0, %v604
    %v606 = vpop.f32.mrf.mxu0
    %v607 = vpop.f32.mrf.mxu0
    %v608 = vpop.f32.mrf.mxu0
    %609 = vdwg.mxu0
    %610 = vmatprep.subr.bf16.mxu0 0
    %611 = vmatpush1.bf16.msra.mxu0 %v465
    %612 = vmatprep.subr.bf16.mxu0 0
    %613 = vmatpush1.bf16.msra.mxu0 %v464
    %614 = vmatprep.subr.bf16.mxu0 0
    %615 = vmatpush1.bf16.msra.mxu0 %v463
    %616 = vmatprep.subr.bf16.mxu0 0
    %617 = vmatpush1.bf16.msra.mxu0 %v462
    %618 = vmatprep.subr.bf16.mxu0 0
    %619 = vmatpush1.bf16.msra.mxu0 %v461
    %620 = vmatprep.subr.bf16.mxu0 0
    %621 = vmatpush1.bf16.msra.mxu0 %v460
    %622 = vmatprep.subr.bf16.mxu0 0
    %623 = vmatpush1.bf16.msra.mxu0 %v459
    %624 = vmatprep.subr.bf16.mxu0 0
    %625 = vmatpush1.bf16.msra.mxu0 %v458
    %626 = vmatprep.subr.bf16.mxu0 0
    %627 = vmatpush2.bf16.msra.mxu0 %v473
    %628 = vmatprep.subr.bf16.mxu0 0
    %629 = vmatpush2.bf16.msra.mxu0 %v472
    %630 = vmatprep.subr.bf16.mxu0 0
    %631 = vmatpush2.bf16.msra.mxu0 %v471
    %632 = vmatprep.subr.bf16.mxu0 0
    %633 = vmatpush2.bf16.msra.mxu0 %v470
    %634 = vmatprep.subr.bf16.mxu0 0
    %635 = vmatpush2.bf16.msra.mxu0 %v469
    %636 = vmatprep.subr.bf16.mxu0 0
    %637 = vmatpush2.bf16.msra.mxu0 %v468
    %638 = vmatprep.subr.bf16.mxu0 0
    %639 = vmatpush2.bf16.msra.mxu0 %v467
    %640 = vmatprep.subr.bf16.mxu0 0
    %641 = vmatpush2.bf16.msra.mxu0 %v466
    %642 = vmatprep.mubr.bf16.mxu0 %v173
    %643 = vmatmul.mubr.bf16.gmra.mxu0 %v172
    %v644 = vpop.f32.mrf.mxu0
    %v645 = vadd.f32 %v605, %v644
    %v646 = vpop.f32.mrf.mxu0
    %v647 = vpop.f32.mrf.mxu0
    %v648 = vpop.f32.mrf.mxu0
    %649 = vdwg.mxu0
    %650 = vmatprep.subr.bf16.mxu0 0
    %651 = vmatpush1.bf16.msra.mxu0 %v481
    %652 = vmatprep.subr.bf16.mxu0 0
    %653 = vmatpush1.bf16.msra.mxu0 %v480
    %654 = vmatprep.subr.bf16.mxu0 0
    %655 = vmatpush1.bf16.msra.mxu0 %v479
    %656 = vmatprep.subr.bf16.mxu0 0
    %657 = vmatpush1.bf16.msra.mxu0 %v478
    %658 = vmatprep.subr.bf16.mxu0 0
    %659 = vmatpush1.bf16.msra.mxu0 %v477
    %660 = vmatprep.subr.bf16.mxu0 0
    %661 = vmatpush1.bf16.msra.mxu0 %v476
    %662 = vmatprep.subr.bf16.mxu0 0
    %663 = vmatpush1.bf16.msra.mxu0 %v475
    %664 = vmatprep.subr.bf16.mxu0 0
    %665 = vmatpush1.bf16.msra.mxu0 %v474
    %666 = vmatprep.subr.bf16.mxu0 0
    %667 = vmatpush2.bf16.msra.mxu0 %v489
    %668 = vmatprep.subr.bf16.mxu0 0
    %669 = vmatpush2.bf16.msra.mxu0 %v488
    %670 = vmatprep.subr.bf16.mxu0 0
    %671 = vmatpush2.bf16.msra.mxu0 %v487
    %672 = vmatprep.subr.bf16.mxu0 0
    %673 = vmatpush2.bf16.msra.mxu0 %v486
    %674 = vmatprep.subr.bf16.mxu0 0
    %675 = vmatpush2.bf16.msra.mxu0 %v485
    %676 = vmatprep.subr.bf16.mxu0 0
    %677 = vmatpush2.bf16.msra.mxu0 %v484
    %678 = vmatprep.subr.bf16.mxu0 0
    %679 = vmatpush2.bf16.msra.mxu0 %v483
    %680 = vmatprep.subr.bf16.mxu0 0
    %681 = vmatpush2.bf16.msra.mxu0 %v482
    %682 = vmatprep.mubr.bf16.mxu0 %v175
    %683 = vmatmul.mubr.bf16.gmra.mxu0 %v174
    %v684 = vpop.f32.mrf.mxu0
    %v685 = vadd.f32 %v645, %v684
    %v686 = vpop.f32.mrf.mxu0
    %v687 = vpop.f32.mrf.mxu0
    %v688 = vpop.f32.mrf.mxu0
    %689 = vdwg.mxu0
    %690 = vmatprep.subr.bf16.mxu0 0
    %691 = vmatpush1.bf16.msra.mxu0 %v497
    %692 = vmatprep.subr.bf16.mxu0 0
    %693 = vmatpush1.bf16.msra.mxu0 %v496
    %694 = vmatprep.subr.bf16.mxu0 0
    %695 = vmatpush1.bf16.msra.mxu0 %v495
    %696 = vmatprep.subr.bf16.mxu0 0
    %697 = vmatpush1.bf16.msra.mxu0 %v494
    %698 = vmatprep.subr.bf16.mxu0 0
    %699 = vmatpush1.bf16.msra.mxu0 %v493
    %700 = vmatprep.subr.bf16.mxu0 0
    %701 = vmatpush1.bf16.msra.mxu0 %v492
    %702 = vmatprep.subr.bf16.mxu0 0
    %703 = vmatpush1.bf16.msra.mxu0 %v491
    %704 = vmatprep.subr.bf16.mxu0 0
    %705 = vmatpush1.bf16.msra.mxu0 %v490
    %706 = vmatprep.subr.bf16.mxu0 0
    %707 = vmatpush2.bf16.msra.mxu0 %v505
    %708 = vmatprep.subr.bf16.mxu0 0
    %709 = vmatpush2.bf16.msra.mxu0 %v504
    %710 = vmatprep.subr.bf16.mxu0 0
    %711 = vmatpush2.bf16.msra.mxu0 %v503
    %712 = vmatprep.subr.bf16.mxu0 0
    %713 = vmatpush2.bf16.msra.mxu0 %v502
    %714 = vmatprep.subr.bf16.mxu0 0
    %715 = vmatpush2.bf16.msra.mxu0 %v501
    %716 = vmatprep.subr.bf16.mxu0 0
    %717 = vmatpush2.bf16.msra.mxu0 %v500
    %718 = vmatprep.subr.bf16.mxu0 0
    %719 = vmatpush2.bf16.msra.mxu0 %v499
    %720 = vmatprep.subr.bf16.mxu0 0
    %721 = vmatpush2.bf16.msra.mxu0 %v498
    %722 = vmatprep.mubr.bf16.mxu0 %v177
    %723 = vmatmul.mubr.bf16.gmra.mxu0 %v176
    %v724 = vpop.f32.mrf.mxu0
    %v725 = vadd.f32 %v685, %v724
    %v726 = vpop.f32.mrf.mxu0
    %v727 = vpop.f32.mrf.mxu0
    %v728 = vpop.f32.mrf.mxu0
    %729 = vdwg.mxu0
    %v730 = vadd.f32 %v25, %v725
    %vm731 = vcmask 31744
    %732 = vst.msk [vmem:[#allocation2] sm:$0xff] %vm731, %v730
    // Predicated region
    $region22: #{tpu_custom_call.1} parent=1 // pred_check
      %p733 = pneg %p19
    $region23: #{tpu_custom_call.1} parent=1 // pred_check_branch
      %735 = sbr.rel (%p733) target = $region25
    $region24: #{tpu_custom_call.1} parent=1 // pred_region
      %v736 = vld [vmem:[#allocation2] sm:$0xff]
      %v737 = vld [vmem:[%s2] sm:$0xf]
      %v738 = vld [vmem:[%s3] sm:$0x1]
      %v740 = vlaneseq
      %v741 = vshrl.u32 %v740, 7
      %v742 = vsub.s32 0, %v741
      %v743 = vrot.slane %v738, %v742
      %v746 = vsel %vm731, %v736, 0
      %vm748 = vcmask 1043456
      %v750 = vsel %vm748, %v737, 0
      %752 = vmatprep.subr.mxu0 0.0
      %753 = vmatpush1.msra.mxu0 0.0
      %754 = vmatprep.subr.mxu0 0.0
      %755 = vmatpush1.msra.mxu0 0.0
      %756 = vmatprep.subr.mxu0 0.0
      %757 = vmatpush1.msra.mxu0 0.0
      %758 = vmatprep.subr.mxu0 0.0
      %759 = vmatpush1.msra.mxu0 0.0
      %760 = vmatprep.subr.mxu0 0.0
      %761 = vmatpush1.msra.mxu0 0.0
      %762 = vmatprep.subr.mxu0 0.0
      %763 = vmatpush1.msra.mxu0 0.0
      %764 = vmatprep.subr.mxu0 0.0
      %765 = vmatpush1.msra.mxu0 0.0
      %766 = vmatprep.subr.mxu0 0.0
      %767 = vmatpush1.msra.mxu0 0.0
      %768 = vmatprep.subr.mxu0 0.0
      %769 = vmatpush1.msra.mxu0 0.0
      %770 = vmatprep.subr.mxu0 0.0
      %771 = vmatpush1.msra.mxu0 0.0
      %772 = vmatprep.subr.mxu0 0.0
      %773 = vmatpush1.msra.mxu0 0.0
      %774 = vmatprep.subr.mxu0 0.0
      %775 = vmatpush1.msra.mxu0 0.0
      %776 = vmatprep.subr.mxu0 0.0
      %777 = vmatpush1.msra.mxu0 0.0
      %778 = vmatprep.subr.mxu0 0.0
      %779 = vmatpush1.msra.mxu0 0.0
      %780 = vmatprep.subr.mxu0 0.0
      %781 = vmatpush1.msra.mxu0 0.0
      %782 = vmatprep.subr.mxu0 0.0
      %783 = vmatpush1.msra.mxu0 %v750
      %784 = vmatprep.subr.mxu0 0.0
      %785 = vmatpush2.msra.mxu0 0.0
      %786 = vmatprep.subr.mxu0 0.0
      %787 = vmatpush2.msra.mxu0 0.0
      %788 = vmatprep.subr.mxu0 0.0
      %789 = vmatpush2.msra.mxu0 0.0
      %790 = vmatprep.subr.mxu0 0.0
      %791 = vmatpush2.msra.mxu0 0.0
      %792 = vmatprep.subr.mxu0 0.0
      %793 = vmatpush2.msra.mxu0 0.0
      %794 = vmatprep.subr.mxu0 0.0
      %795 = vmatpush2.msra.mxu0 0.0
      %796 = vmatprep.subr.mxu0 0.0
      %797 = vmatpush2.msra.mxu0 0.0
      %798 = vmatprep.subr.mxu0 0.0
      %799 = vmatpush2.msra.mxu0 0.0
      %800 = vmatprep.subr.mxu0 0.0
      %801 = vmatpush2.msra.mxu0 0.0
      %802 = vmatprep.subr.mxu0 0.0
      %803 = vmatpush2.msra.mxu0 0.0
      %804 = vmatprep.subr.mxu0 0.0
      %805 = vmatpush2.msra.mxu0 0.0
      %806 = vmatprep.subr.mxu0 0.0
      %807 = vmatpush2.msra.mxu0 0.0
      %808 = vmatprep.subr.mxu0 0.0
      %809 = vmatpush2.msra.mxu0 0.0
      %810 = vmatprep.subr.mxu0 0.0
      %811 = vmatpush2.msra.mxu0 0.0
      %812 = vmatprep.subr.mxu0 0.0
      %813 = vmatpush2.msra.mxu0 0.0
      %814 = vmatprep.subr.mxu0 0.0
      %815 = vmatpush2.msra.mxu0 0.0
      %816 = vmatprep.mubr.f32.mxu0 0.0
      %817 = vmatmul.mubr.f32.gmra.mxu0 %v746
      %v818 = vpop.f32.mrf.mxu0
      %v819 = vadd.f32 %v743, %v818
      %v820 = vpop.f32.mrf.mxu0
      %821 = vdwg.mxu0
      %822 = vst [vmem:[#allocation3] sm:$0xff] %v819
    $region25: #{tpu_custom_call.1} parent=1 // pred_fallthru
      _
    // Predicated region
    $region26: #{tpu_custom_call.1} parent=1 // pred_check
      _
    $region27: #{tpu_custom_call.1} parent=1 // pred_check_branch
      %824 = sbr.rel (0) target = $region29
    $region28: #{tpu_custom_call.1} parent=1 // pred_region
      %s826 = ssub.s32 128, 128
      %827 = vsyncadd [#allocation4], %s826
      %s829 = sshll.u32 [#allocation3], 4
      %s830 = int_to_ptr.vmem [resolvable:$true] %s829
      %832 = dma.vmem_to_hbm [thread:$0]  %s830, 128, %s4, [#allocation4]
    $region29: #{tpu_custom_call.1} parent=1 // pred_fallthru
      _
    // Predicated region
    $region30: #{tpu_custom_call.1} parent=1 // pred_check
      _
    $region31: #{tpu_custom_call.1} parent=1 // pred_check_branch
      %834 = sbr.rel (0) target = $region33
    $region32: #{tpu_custom_call.1} parent=1 // pred_region
      %835 = dma.done [#allocation4], 128
    $region33: #{tpu_custom_call.1} parent=1 // pred_fallthru
      _
    %836 = vsyncpa [#allocation4], 1

</llo_original>
